<compile_context>
chip_gen: v6e
topology: v6e:2x2x1
jax: 0.10.0
libtpu: 0.0.40
codegen_flags: <defaults>
</compile_context>

<pallas_src>
import jax
import jax.numpy as jnp
from jax import lax
from jax.experimental import pallas as pl
from jax.experimental.pallas import tpu as pltpu

# ---------------- config (mirrors the PyTorch module's config dict) ----------
B = 2            # batch
FEAT = 768       # text / image encoder hidden size (BERT / ViT base)
H = 32           # config['model']['hidden_dim']
E = 4            # config['model']['moe']['num_experts']
TOP_K = 2        # config['model']['moe']['top_k']
LN_EPS = 1e-5
N_MOD = 3        # text, image, graph (stacked along dim=1 in the torch module)

NTOK = N_MOD * B          # 6 real tokens
NTOK_PAD = 8              # sublane-aligned token rows (rows 6..7 are padding)
MIX = E * H + E           # 132 = lane-dense expert outputs (128) + gate logits (4)

# ---- row layout of the packed f32 constants slab -----------------------------
_R_WMOE0, _R_WMOE1 = 0, H                     # w_moe     [32, 132]
_R_BIAS0, _R_BIAS1 = H, H + NTOK_PAD          # bias_mix  [8, 132]
_R_WG0, _R_WG1 = _R_BIAS1, _R_BIAS1 + H       # wg        [32, 32]  (cols 0:32)
_R_EXP0, _R_EXP1 = _R_WG1, _R_WG1 + E         # expand    [4, 128]  (cols 0:128)
_R_GAMMA = _R_EXP1                            # LN gamma  [1, 32]
_R_BETA = _R_EXP1 + 1                         # LN beta   [1, 32]
SLAB_ROWS = ((_R_BETA + 1 + 7) // 8) * 8      # pad rows to a multiple of 8 (-> 80)

# advisory cost estimate for XLA scheduling around the custom call
_FLOPS = 2 * NTOK_PAD * (FEAT * 2 * H + H * H + H * MIX + E * E * H)
_BYTES = (NTOK_PAD * FEAT * 2 + NTOK_PAD * H * 4      # ti (bf16), gr (f32)
          + FEAT * 2 * H * 2                          # w_ti (bf16)
          + SLAB_ROWS * MIX * 4                       # constants slab (f32)
          + NTOK_PAD * H * 4)                         # output (f32)
_TRANS = NTOK_PAD * E                                 # exp() calls


# ------------------------------ Pallas kernel --------------------------------
def unigraph2_kernel(ti_ref, gr_ref, wti_ref, slab_ref, out_ref):
    f32 = jnp.float32

    # ---- GEMM-1a: text + image projections, one aligned K=768 bf16 GEMM -----
    # wti = [wt | wi]; rows 0..B-1 are text tokens, rows B..2B-1 image tokens.
    p_ti = jnp.dot(ti_ref[...], wti_ref[...], preferred_element_type=f32)  # [8, 2H]
    row = lax.broadcasted_iota(jnp.int32, (NTOK_PAD, H), 0)
    sel = jnp.where(row < B, p_ti[:, :H], p_ti[:, H:2 * H])                # [8, H]

    # ---- GEMM-1b: graph projection (K = H = 32) ------------------------------
    wg = slab_ref[_R_WG0:_R_WG1, :H]                                       # [32, 32]
    p_g = jnp.dot(gr_ref[...], wg, preferred_element_type=f32)             # [8, H]

    # projected tokens WITHOUT biases (biases are pre-folded into bias_mix)
    tok = sel + p_g                                                         # [8, H]

    # ---- GEMM-2: fused experts + gate; all biases arrive via bias_mix --------
    w_moe = slab_ref[_R_WMOE0:_R_WMOE1, :]                                  # [32, 132]
    mix = jnp.dot(tok, w_moe, preferred_element_type=f32) \
        + slab_ref[_R_BIAS0:_R_BIAS1, :]                                    # [8, 132]
    expert_all = mix[:, :E * H]      # [8, 128] lane-dense expert outputs
    logits = mix[:, E * H:]          # [8, 4]   gate logits

    # ---- gating: top-k of softmax == top-k of exp(logits); the softmax
    #      denominator cancels in the renorm, so only one reciprocal remains. -
    el = jnp.exp(logits - jnp.max(logits, axis=-1, keepdims=True))
    eidx = lax.broadcasted_iota(jnp.int32, (NTOK_PAD, E), 1)
    keep = jnp.zeros((NTOK_PAD, E), dtype=jnp.bool_)
    work = el
    for _ in range(TOP_K):                       # unrolled, TOP_K is tiny
        m = jnp.max(work, axis=-1, keepdims=True)
        pick = jnp.min(jnp.where(work == m, eidx, E), axis=-1, keepdims=True)
        hit = eidx == pick                       # lowest index wins ties (== lax.top_k)
        keep = jnp.logical_or(keep, hit)
        work = jnp.where(hit, -1.0, work)        # el >= 0, so -1 is never re-picked
    w = jnp.where(keep, el, 0.0)
    # approx=True (EUP vrcp, ~2^-12 rel err) would eat most of the 1e-4 budget.
    w = w * pl.reciprocal(jnp.sum(w, axis=-1, keepdims=True), approx=False)

    # ---- weighted combine: MXU broadcast of gate weights onto expert lanes,
    #      then a 4-way lane fold on the XLU (two rolls + adds, no fold matmul).
    expand = slab_ref[_R_EXP0:_R_EXP1, :E * H]                              # [4, 128] 0/1
    w_lanes = jnp.dot(w, expand, preferred_element_type=f32)                # [8, 128]
    weighted = expert_all * w_lanes
    y = weighted + pltpu.roll(weighted, 2 * H, 1)        # pairs experts (0,2) and (1,3)
    z = y + pltpu.roll(y, H, 1)                          # lanes 0:H hold the full sum
    moe_out = z[:, :H]                                                      # [8, 32]
    # TODO(synk): capacity_factor-based token dropping has no effect in this
    # dense (all-experts-evaluated) formulation and is omitted.

    # ---- LayerNorm over the feature axis + affine -----------------------------
    mean = jnp.mean(moe_out, axis=-1, keepdims=True)
    cen = moe_out - mean
    var = jnp.mean(cen * cen, axis=-1, keepdims=True)
    normed = cen * lax.rsqrt(var + LN_EPS)
    gamma = slab_ref[_R_GAMMA:_R_GAMMA + 1, :H]
    beta = slab_ref[_R_BETA:_R_BETA + 1, :H]
    out_ref[...] = normed * gamma + beta


# ------------------------------ parameter packing -----------------------------
def pack_params(p):
    """Pack the torch-style params into the kernel's 2 weight operands."""
    f32 = jnp.float32

    # big slab: [wt | wi], bf16 (lossless: params live on the bf16 grid)
    w_ti = jnp.concatenate([p["wt"], p["wi"]], axis=1).astype(jnp.bfloat16)  # [768, 64]

    # fused MoE weight: experts packed lane-dense (expert e -> lanes e*H:(e+1)*H)
    # followed by the gate columns.
    wexp_packed = jnp.transpose(p["wexp"], (1, 0, 2)).reshape(H, E * H)      # [32, 128]
    w_moe = jnp.concatenate([wexp_packed, p["wgate"]], axis=1)               # [32, 132]

    # per-modality GEMM-2 constant: projection bias pushed through the MoE
    # weights + expert/gate biases, broadcast onto the 8 padded token rows.
    bexp_flat = p["bexp"].reshape(1, E * H)

    def bias_mix_row(b_m):
        return jnp.concatenate([b_m @ wexp_packed + bexp_flat,
                                b_m @ p["wgate"] + p["bgate"]], axis=1)      # [1, 132]

    bias_rows = jnp.concatenate([
        jnp.tile(bias_mix_row(p["bt"]), (B, 1)),
        jnp.tile(bias_mix_row(p["bi"]), (B, 1)),
        jnp.tile(bias_mix_row(p["bg"]), (B, 1)),
        jnp.zeros((NTOK_PAD - NTOK, MIX), f32)], axis=0)                     # [8, 132]

    # 0/1 expand matrix: broadcasts gate weight e onto expert-e's H lanes.
    lane = jnp.arange(E * H)[None, :] // H
    expand = (lane == jnp.arange(E)[:, None]).astype(f32)                    # [4, 128]

    slab = jnp.zeros((SLAB_ROWS, MIX), f32)
    slab = slab.at[_R_WMOE0:_R_WMOE1, :].set(w_moe)
    slab = slab.at[_R_BIAS0:_R_BIAS1, :].set(bias_rows)
    slab = slab.at[_R_WG0:_R_WG1, :H].set(p["wg"])
    slab = slab.at[_R_EXP0:_R_EXP1, :E * H].set(expand)
    slab = slab.at[_R_GAMMA, :H].set(p["gamma"][0])
    slab = slab.at[_R_BETA, :H].set(p["beta"][0])
    return {"w_ti": w_ti, "slab": slab}


# ------------------------------ wrapper ---------------------------------------
@jax.jit
def unigraph2_forward(text_feat, image_feat, graph_feat, kparams):
    # modality-major token rows: 0..1 text, 2..3 image, 4..5 graph, 6..7 pad.
    ti = jnp.concatenate(
        [text_feat, image_feat,
         jnp.zeros((NTOK_PAD - 2 * B, FEAT), jnp.float32)], axis=0
    ).astype(jnp.bfloat16)                                                   # [8, 768]
    gr = jnp.concatenate(
        [jnp.zeros((2 * B, H), jnp.float32), graph_feat,
         jnp.zeros((NTOK_PAD - NTOK, H), jnp.float32)], axis=0)              # [8, 32] f32

    vmem = pltpu.MemorySpace.VMEM
    out = pl.pallas_call(
        unigraph2_kernel,
        out_shape=jax.ShapeDtypeStruct((NTOK_PAD, H), jnp.float32),
        in_specs=[pl.BlockSpec(memory_space=vmem)] * 4,
        out_specs=pl.BlockSpec(memory_space=vmem),
        cost_estimate=pl.CostEstimate(flops=_FLOPS, transcendentals=_TRANS,
                                      bytes_accessed=_BYTES),
        # no grid: single invocation, whole (tiny) working set resident in VMEM.
        # TODO(synk): for large batches add a token-axis grid with
        # dimension_semantics=('parallel',) so both v7x TensorCores are used,
        # sized >=256 token rows on v6e/v7x and multiples of 128 on v5e.
    )(ti, gr, kparams["w_ti"], kparams["slab"])

    unified = out[:NTOK].reshape(N_MOD, B, H)        # modality-major slab
    return {"text": unified[0], "image": unified[1], "graph": unified[2]}


# ------------------------------ pure-JAX reference -----------------------------
def reference_forward(text_feat, image_feat, graph_feat, p):
    t = text_feat @ p["wt"] + p["bt"]
    im = image_feat @ p["wi"] + p["bi"]
    g = graph_feat @ p["wg"] + p["bg"]
    tok = jnp.stack([t, im, g], axis=1).reshape(B * N_MOD, H)
    probs = jax.nn.softmax(tok @ p["wgate"] + p["bgate"], axis=-1)
    _, topi = lax.top_k(probs, TOP_K)
    keep = jnp.zeros_like(probs).at[jnp.arange(tok.shape[0])[:, None], topi].set(1.0)
    w = probs * keep
    w = w / jnp.sum(w, axis=-1, keepdims=True)
    expert_outs = jnp.einsum("nh,ehk->enk", tok, p["wexp"]) + p["bexp"]      # [E, N, H]
    moe_out = jnp.einsum("ne,enk->nk", w, expert_outs)
    mean = jnp.mean(moe_out, -1, keepdims=True)
    var = jnp.mean((moe_out - mean) ** 2, -1, keepdims=True)
    unified = (moe_out - mean) / jnp.sqrt(var + LN_EPS) * p["gamma"] + p["beta"]
    unified = unified.reshape(B, N_MOD, H)
    return {"text": unified[:, 0], "image": unified[:, 1], "graph": unified[:, 2]}


# ------------------------------ main -------------------------------------------
if __name__ == "__main__":
    key = jax.random.PRNGKey(0)
    ks = jax.random.split(key, 16)

    def init(k, shape, scale=0.05):
        v = (scale * jax.random.normal(k, shape)).astype(jnp.float32)
        # snap to the bf16 grid so the bf16 operands fed to the kernel hold
        # exactly the same values the f32 reference uses.
        return v.astype(jnp.bfloat16).astype(jnp.float32)

    # TODO(synk): pretrained HF text/image encoders and the external GraphEncoder
    # are separate frozen modules; their pooled CLS outputs are supplied as inputs.
    text_feat = init(ks[0], (B, FEAT), 1.0)
    image_feat = init(ks[1], (B, FEAT), 1.0)
    graph_feat = init(ks[2], (B, H), 1.0)

    params = {
        "wt": init(ks[3], (FEAT, H)), "bt": init(ks[4], (1, H)),
        "wi": init(ks[5], (FEAT, H)), "bi": init(ks[6], (1, H)),
        "wg": init(ks[7], (H, H)),    "bg": init(ks[8], (1, H)),
        "wgate": init(ks[9], (H, E)), "bgate": init(ks[10], (1, E)),
        "wexp": init(ks[11], (E, H, H)), "bexp": init(ks[12], (E, 1, H)),
        # nonzero / non-unit LN affine so a gamma/beta swap cannot pass silently
        "gamma": 1.0 + init(ks[13], (1, H), 0.2),
        "beta": init(ks[14], (1, H), 0.2),
    }
    kparams = pack_params(params)

    out = unigraph2_forward(text_feat, image_feat, graph_feat, kparams)
    out = jax.tree_util.tree_map(jax.block_until_ready, out)

    ref = reference_forward(text_feat, image_feat, graph_feat, params)
    for k in ("text", "image", "graph"):
        assert out[k].shape == (B, H), k
        assert jnp.allclose(out[k], ref[k], atol=1e-4, rtol=1e-4), (
            k, float(jnp.max(jnp.abs(out[k] - ref[k]))))

    print("KERNEL_OK")
</pallas_src>

<mosaic_0001>
module attributes {stable_mosaic.version = 11 : i64} {
  func.func @unigraph2_kernel(%arg0: memref<8x768xbf16, #tpu.memory_space<vmem>>, %arg1: memref<8x32xf32, #tpu.memory_space<vmem>>, %arg2: memref<768x64xbf16, #tpu.memory_space<vmem>>, %arg3: memref<80x132xf32, #tpu.memory_space<vmem>>, %arg4: memref<8x32xf32, #tpu.memory_space<vmem>>) attributes {dimension_semantics = [], scalar_prefetch = 0 : i64, scratch_operands = 0 : i64, tpu.core_type = #tpu.core_type<tc>} {
    %c0 = arith.constant 0 : index
    %c0_0 = arith.constant 0 : index
    %0 = vector.load %arg0[%c0, %c0_0] : memref<8x768xbf16, #tpu.memory_space<vmem>>, vector<8x768xbf16>
    %c0_1 = arith.constant 0 : index
    %c0_2 = arith.constant 0 : index
    %1 = vector.load %arg2[%c0_1, %c0_2] : memref<768x64xbf16, #tpu.memory_space<vmem>>, vector<768x64xbf16>
    %cst = arith.constant dense<0.000000e+00> : vector<8x64xf32>
    %2 = tpu.matmul %0, %1, %cst {dimension_numbers = #tpu.dot_dimension_numbers<[1], [0], [0], [1], [0, 0, 1, 1], [], []>} : vector<8x768xbf16>, vector<768x64xbf16>, vector<8x64xf32> -> vector<8x64xf32>
    %3 = tpu.iota {dimensions = array<i32: 0>} : vector<8x32xi32>
    %c2_i32 = arith.constant 2 : i32
    %4 = vector.broadcast %c2_i32 : i32 to vector<8x32xi32>
    %5 = arith.cmpi slt, %3, %4 : vector<8x32xi32>
    %6 = vector.extract_strided_slice %2 {offsets = [0, 0], sizes = [8, 32], strides = [1, 1]} : vector<8x64xf32> to vector<8x32xf32>
    %7 = vector.extract_strided_slice %2 {offsets = [0, 32], sizes = [8, 32], strides = [1, 1]} : vector<8x64xf32> to vector<8x32xf32>
    %8 = arith.select %5, %6, %7 : vector<8x32xi1>, vector<8x32xf32>
    %c40 = arith.constant 40 : index
    %c0_3 = arith.constant 0 : index
    %9 = vector.load %arg3[%c40, %c0_3] : memref<80x132xf32, #tpu.memory_space<vmem>>, vector<32x32xf32>
    %c0_4 = arith.constant 0 : index
    %c0_5 = arith.constant 0 : index
    %10 = vector.load %arg1[%c0_4, %c0_5] : memref<8x32xf32, #tpu.memory_space<vmem>>, vector<8x32xf32>
    %cst_6 = arith.constant dense<0.000000e+00> : vector<8x32xf32>
    %11 = tpu.matmul %10, %9, %cst_6 {dimension_numbers = #tpu.dot_dimension_numbers<[1], [0], [0], [1], [0, 0, 1, 1], [], []>} : vector<8x32xf32>, vector<32x32xf32>, vector<8x32xf32> -> vector<8x32xf32>
    %12 = arith.addf %8, %11 : vector<8x32xf32>
    %c0_7 = arith.constant 0 : index
    %c0_8 = arith.constant 0 : index
    %13 = vector.load %arg3[%c0_7, %c0_8] : memref<80x132xf32, #tpu.memory_space<vmem>>, vector<32x132xf32>
    %cst_9 = arith.constant dense<0.000000e+00> : vector<8x132xf32>
    %14 = tpu.matmul %12, %13, %cst_9 {dimension_numbers = #tpu.dot_dimension_numbers<[1], [0], [0], [1], [0, 0, 1, 1], [], []>} : vector<8x32xf32>, vector<32x132xf32>, vector<8x132xf32> -> vector<8x132xf32>
    %c32 = arith.constant 32 : index
    %c0_10 = arith.constant 0 : index
    %15 = vector.load %arg3[%c32, %c0_10] : memref<80x132xf32, #tpu.memory_space<vmem>>, vector<8x132xf32>
    %16 = arith.addf %14, %15 : vector<8x132xf32>
    %17 = vector.extract_strided_slice %16 {offsets = [0, 0], sizes = [8, 128], strides = [1, 1]} : vector<8x132xf32> to vector<8x128xf32>
    %18 = vector.extract_strided_slice %16 {offsets = [0, 128], sizes = [8, 4], strides = [1, 1]} : vector<8x132xf32> to vector<8x4xf32>
    %cst_11 = arith.constant dense<0xFF800000> : vector<8xf32>
    %19 = vector.multi_reduction <maximumf>, %18, %cst_11 [1] : vector<8x4xf32> to vector<8xf32>
    %20 = vector.shape_cast %19 : vector<8xf32> to vector<8x1xf32>
    %21 = vector.broadcast %20 : vector<8x1xf32> to vector<8x4xf32>
    %22 = arith.subf %18, %21 : vector<8x4xf32>
    %23 = math.exp %22 : vector<8x4xf32>
    %24 = tpu.iota {dimensions = array<i32: 1>} : vector<8x4xi32>
    %false = arith.constant false
    %25 = vector.broadcast %false : i1 to vector<8x4xi1>
    %cst_12 = arith.constant dense<0xFF800000> : vector<8xf32>
    %26 = vector.multi_reduction <maximumf>, %23, %cst_12 [1] : vector<8x4xf32> to vector<8xf32>
    %27 = vector.shape_cast %26 : vector<8xf32> to vector<8x1xf32>
    %28 = vector.broadcast %27 : vector<8x1xf32> to vector<8x4xf32>
    %29 = arith.cmpf oeq, %23, %28 : vector<8x4xf32>
    %c4_i32 = arith.constant 4 : i32
    %30 = vector.broadcast %c4_i32 : i32 to vector<8x4xi32>
    %31 = arith.select %29, %24, %30 : vector<8x4xi1>, vector<8x4xi32>
    %cst_13 = arith.constant dense<2147483647> : vector<8xi32>
    %32 = vector.multi_reduction <minsi>, %31, %cst_13 [1] : vector<8x4xi32> to vector<8xi32>
    %33 = vector.shape_cast %32 : vector<8xi32> to vector<8x1xi32>
    %34 = vector.broadcast %33 : vector<8x1xi32> to vector<8x4xi32>
    %35 = arith.cmpi eq, %24, %34 : vector<8x4xi32>
    %36 = arith.ori %25, %35 : vector<8x4xi1>
    %cst_14 = arith.constant -1.000000e+00 : f32
    %37 = vector.broadcast %cst_14 : f32 to vector<8x4xf32>
    %38 = arith.select %35, %37, %23 : vector<8x4xi1>, vector<8x4xf32>
    %cst_15 = arith.constant dense<0xFF800000> : vector<8xf32>
    %39 = vector.multi_reduction <maximumf>, %38, %cst_15 [1] : vector<8x4xf32> to vector<8xf32>
    %40 = vector.shape_cast %39 : vector<8xf32> to vector<8x1xf32>
    %41 = vector.broadcast %40 : vector<8x1xf32> to vector<8x4xf32>
    %42 = arith.cmpf oeq, %38, %41 : vector<8x4xf32>
    %c4_i32_16 = arith.constant 4 : i32
    %43 = vector.broadcast %c4_i32_16 : i32 to vector<8x4xi32>
    %44 = arith.select %42, %24, %43 : vector<8x4xi1>, vector<8x4xi32>
    %cst_17 = arith.constant dense<2147483647> : vector<8xi32>
    %45 = vector.multi_reduction <minsi>, %44, %cst_17 [1] : vector<8x4xi32> to vector<8xi32>
    %46 = vector.shape_cast %45 : vector<8xi32> to vector<8x1xi32>
    %47 = vector.broadcast %46 : vector<8x1xi32> to vector<8x4xi32>
    %48 = arith.cmpi eq, %24, %47 : vector<8x4xi32>
    %49 = arith.ori %36, %48 : vector<8x4xi1>
    %cst_18 = arith.constant 0.000000e+00 : f32
    %50 = vector.broadcast %cst_18 : f32 to vector<8x4xf32>
    %51 = arith.select %49, %23, %50 : vector<8x4xi1>, vector<8x4xf32>
    %cst_19 = arith.constant dense<0.000000e+00> : vector<8xf32>
    %52 = vector.multi_reduction <add>, %51, %cst_19 [1] : vector<8x4xf32> to vector<8xf32>
    %53 = vector.shape_cast %52 : vector<8xf32> to vector<8x1xf32>
    %54 = tpu.reciprocal %53 : vector<8x1xf32> -> vector<8x1xf32>
    %55 = vector.broadcast %54 : vector<8x1xf32> to vector<8x4xf32>
    %56 = arith.mulf %51, %55 : vector<8x4xf32>
    %c72 = arith.constant 72 : index
    %c0_20 = arith.constant 0 : index
    %57 = vector.load %arg3[%c72, %c0_20] : memref<80x132xf32, #tpu.memory_space<vmem>>, vector<4x128xf32>
    %cst_21 = arith.constant dense<0.000000e+00> : vector<8x128xf32>
    %58 = tpu.matmul %56, %57, %cst_21 {dimension_numbers = #tpu.dot_dimension_numbers<[1], [0], [0], [1], [0, 0, 1, 1], [], []>} : vector<8x4xf32>, vector<4x128xf32>, vector<8x128xf32> -> vector<8x128xf32>
    %59 = arith.mulf %17, %58 : vector<8x128xf32>
    %c64_i32 = arith.constant 64 : i32
    %60 = tpu.dynamic_rotate %59 by %c64_i32 dim 1 : vector<8x128xf32>, i32 -> vector<8x128xf32>
    %61 = arith.addf %59, %60 : vector<8x128xf32>
    %c32_i32 = arith.constant 32 : i32
    %62 = tpu.dynamic_rotate %61 by %c32_i32 dim 1 : vector<8x128xf32>, i32 -> vector<8x128xf32>
    %63 = arith.addf %61, %62 : vector<8x128xf32>
    %64 = vector.extract_strided_slice %63 {offsets = [0, 0], sizes = [8, 32], strides = [1, 1]} : vector<8x128xf32> to vector<8x32xf32>
    %cst_22 = arith.constant dense<0.000000e+00> : vector<8xf32>
    %65 = vector.multi_reduction <add>, %64, %cst_22 [1] : vector<8x32xf32> to vector<8xf32>
    %66 = vector.shape_cast %65 : vector<8xf32> to vector<8x1xf32>
    %cst_23 = arith.constant 3.200000e+01 : f32
    %67 = vector.broadcast %cst_23 : f32 to vector<8x1xf32>
    %68 = arith.divf %66, %67 : vector<8x1xf32>
    %69 = vector.broadcast %68 : vector<8x1xf32> to vector<8x32xf32>
    %70 = arith.subf %64, %69 : vector<8x32xf32>
    %71 = arith.mulf %70, %70 : vector<8x32xf32>
    %cst_24 = arith.constant dense<0.000000e+00> : vector<8xf32>
    %72 = vector.multi_reduction <add>, %71, %cst_24 [1] : vector<8x32xf32> to vector<8xf32>
    %73 = vector.shape_cast %72 : vector<8xf32> to vector<8x1xf32>
    %cst_25 = arith.constant 3.200000e+01 : f32
    %74 = vector.broadcast %cst_25 : f32 to vector<8x1xf32>
    %75 = arith.divf %73, %74 : vector<8x1xf32>
    %cst_26 = arith.constant 9.99999974E-6 : f32
    %76 = vector.broadcast %cst_26 : f32 to vector<8x1xf32>
    %77 = arith.addf %75, %76 : vector<8x1xf32>
    %78 = math.rsqrt %77 : vector<8x1xf32>
    %79 = vector.broadcast %78 : vector<8x1xf32> to vector<8x32xf32>
    %80 = arith.mulf %70, %79 : vector<8x32xf32>
    %c76 = arith.constant 76 : index
    %c0_27 = arith.constant 0 : index
    %81 = vector.load %arg3[%c76, %c0_27] : memref<80x132xf32, #tpu.memory_space<vmem>>, vector<1x32xf32>
    %c77 = arith.constant 77 : index
    %c0_28 = arith.constant 0 : index
    %82 = vector.load %arg3[%c77, %c0_28] : memref<80x132xf32, #tpu.memory_space<vmem>>, vector<1x32xf32>
    %83 = vector.broadcast %81 : vector<1x32xf32> to vector<8x32xf32>
    %84 = arith.mulf %80, %83 : vector<8x32xf32>
    %85 = vector.broadcast %82 : vector<1x32xf32> to vector<8x32xf32>
    %86 = arith.addf %84, %85 : vector<8x32xf32>
    %c0_29 = arith.constant 0 : index
    %c0_30 = arith.constant 0 : index
    %87 = vector.load %arg4[%c0_29, %c0_30] : memref<8x32xf32, #tpu.memory_space<vmem>>, vector<8x32xf32>
    tpu.vector_store %arg4[%c0_29, %c0_30], %86 {strides = array<i32>} : memref<8x32xf32, #tpu.memory_space<vmem>>, vector<8x32xf32>,
    return
  }
}

</mosaic_0001>

<llo_original>
// kernel: unigraph2_forward.1
$region0: #{unigraph2_forward.1}
  #allocation0 [shape = 'u32[]', space=smem, size = 0x4, offset = 0x4, fixed_abs, tag = 'smem constant byte address 0x4 - core index']
  #allocation1 [shape = 'u32[144,128]{1,0:T(1,128)}', space=vmem, size = 0x12000, scoped, tag = 'internal scratch']
  %s0 = inlined_call_operand.vmem [shape: bf16[8,768], index: 0, kind: input, shape index: {}]
  %s1 = inlined_call_operand.vmem [shape: f32[8,32], index: 1, kind: input, shape index: {}]
  %s2 = inlined_call_operand.vmem [shape: bf16[768,64], index: 2, kind: input, shape index: {}]
  %s3 = inlined_call_operand.vmem [shape: f32[80,132], index: 3, kind: input, shape index: {}]
  %s4 = inlined_call_operand.vmem [shape: f32[8,32], index: 4, kind: output, shape index: {}]
  %s5 = sld [smem:[#allocation0]]
  $region26: #{unigraph2_forward.1} parent=0
    _
  %s7 = ssub.s32 1, %s5
  %s8 = scalar_select 0, %s7, %s5
  // Predicated region
  $region2: #{unigraph2_forward.1} parent=0 // pred_check
    _
  $region3: #{unigraph2_forward.1} parent=0 // pred_check_branch
    %10 = sbr.rel (0) target = $region5
  $region4: #{unigraph2_forward.1} parent=0 // pred_region
    _
  $region5: #{unigraph2_forward.1} parent=0 // pred_fallthru
    _
  // Predicated region
  $region6: #{unigraph2_forward.1} parent=0 // pred_check
    _
  $region7: #{unigraph2_forward.1} parent=0 // pred_check_branch
    %12 = sbr.rel (0) target = $region9
  $region8: #{unigraph2_forward.1} parent=0 // pred_region
    _
  $region9: #{unigraph2_forward.1} parent=0 // pred_fallthru
    _
  // Predicated region
  $region10: #{unigraph2_forward.1} parent=0 // pred_check
    _
  $region11: #{unigraph2_forward.1} parent=0 // pred_check_branch
    %14 = sbr.rel (0) target = $region13
  $region12: #{unigraph2_forward.1} parent=0 // pred_region
    _
  $region13: #{unigraph2_forward.1} parent=0 // pred_fallthru
    _
  // Predicated region
  $region14: #{unigraph2_forward.1} parent=0 // pred_check
    _
  $region15: #{unigraph2_forward.1} parent=0 // pred_check_branch
    %16 = sbr.rel (0) target = $region17
  $region16: #{unigraph2_forward.1} parent=0 // pred_region
    _
  $region17: #{unigraph2_forward.1} parent=0 // pred_fallthru
    _
  %v18 = vld [vmem:[%s0] sm:$0xff]
  %v19 = vld [vmem:[%s0 + $0x8] sm:$0xff]
  %v20 = vld [vmem:[%s0 + $0x10] sm:$0xff]
  %v21 = vld [vmem:[%s2] sm:$0xf]
  %v22 = vld [vmem:[%s2 + $0x4] sm:$0xf]
  %v23 = vld [vmem:[%s2 + $0x8] sm:$0xf]
  %v24 = vld [vmem:[%s2 + $0xc] sm:$0xf]
  %v25 = vld [vmem:[%s2 + $0x10] sm:$0xf]
  %v26 = vld [vmem:[%s2 + $0x14] sm:$0xf]
  %v27 = vld [vmem:[%s2 + $0x18] sm:$0xf]
  %v28 = vld [vmem:[%s2 + $0x1c] sm:$0xf]
  %v29 = vld [vmem:[%s2 + $0x20] sm:$0xf]
  %v30 = vld [vmem:[%s2 + $0x24] sm:$0xf]
  %v31 = vld [vmem:[%s2 + $0x28] sm:$0xf]
  %v32 = vld [vmem:[%s2 + $0x2c] sm:$0xf]
  %v33 = vld [vmem:[%s2 + $0x30] sm:$0xf]
  %v34 = vld [vmem:[%s2 + $0x34] sm:$0xf]
  %v35 = vld [vmem:[%s2 + $0x38] sm:$0xf]
  %v36 = vld [vmem:[%s2 + $0x3c] sm:$0xf]
  %v37 = vld [vmem:[%s2 + $0x40] sm:$0xf]
  %v38 = vld [vmem:[%s2 + $0x44] sm:$0xf]
  %v39 = vld [vmem:[%s2 + $0x48] sm:$0xf]
  %v40 = vld [vmem:[%s2 + $0x4c] sm:$0xf]
  %v41 = vld [vmem:[%s2 + $0x50] sm:$0xf]
  %v42 = vld [vmem:[%s2 + $0x54] sm:$0xf]
  %v43 = vld [vmem:[%s2 + $0x58] sm:$0xf]
  %v44 = vld [vmem:[%s2 + $0x5c] sm:$0xf]
  %v45 = vld [vmem:[%s2 + $0x60] sm:$0xf]
  %v46 = vld [vmem:[%s2 + $0x64] sm:$0xf]
  %v47 = vld [vmem:[%s2 + $0x68] sm:$0xf]
  %v48 = vld [vmem:[%s2 + $0x6c] sm:$0xf]
  %v49 = vld [vmem:[%s2 + $0x70] sm:$0xf]
  %v50 = vld [vmem:[%s2 + $0x74] sm:$0xf]
  %v51 = vld [vmem:[%s2 + $0x78] sm:$0xf]
  %v52 = vld [vmem:[%s2 + $0x7c] sm:$0xf]
  %v53 = vld [vmem:[%s2 + $0x80] sm:$0xf]
  %v54 = vld [vmem:[%s2 + $0x84] sm:$0xf]
  %v55 = vld [vmem:[%s2 + $0x88] sm:$0xf]
  %v56 = vld [vmem:[%s2 + $0x8c] sm:$0xf]
  %v57 = vld [vmem:[%s2 + $0x90] sm:$0xf]
  %v58 = vld [vmem:[%s2 + $0x94] sm:$0xf]
  %v59 = vld [vmem:[%s2 + $0x98] sm:$0xf]
  %v60 = vld [vmem:[%s2 + $0x9c] sm:$0xf]
  %v61 = vld [vmem:[%s2 + $0xa0] sm:$0xf]
  %v62 = vld [vmem:[%s2 + $0xa4] sm:$0xf]
  %v63 = vld [vmem:[%s2 + $0xa8] sm:$0xf]
  %v64 = vld [vmem:[%s2 + $0xac] sm:$0xf]
  %v65 = vld [vmem:[%s2 + $0xb0] sm:$0xf]
  %v66 = vld [vmem:[%s2 + $0xb4] sm:$0xf]
  %v67 = vld [vmem:[%s2 + $0xb8] sm:$0xf]
  %v68 = vld [vmem:[%s2 + $0xbc] sm:$0xf]
  %v69 = vld [vmem:[%s2 + $0xc0] sm:$0xf]
  %v70 = vld [vmem:[%s2 + $0xc4] sm:$0xf]
  %v71 = vld [vmem:[%s2 + $0xc8] sm:$0xf]
  %v72 = vld [vmem:[%s2 + $0xcc] sm:$0xf]
  %v73 = vld [vmem:[%s2 + $0xd0] sm:$0xf]
  %v74 = vld [vmem:[%s2 + $0xd4] sm:$0xf]
  %v75 = vld [vmem:[%s2 + $0xd8] sm:$0xf]
  %v76 = vld [vmem:[%s2 + $0xdc] sm:$0xf]
  %v77 = vld [vmem:[%s2 + $0xe0] sm:$0xf]
  %v78 = vld [vmem:[%s2 + $0xe4] sm:$0xf]
  %v79 = vld [vmem:[%s2 + $0xe8] sm:$0xf]
  %v80 = vld [vmem:[%s2 + $0xec] sm:$0xf]
  %v81 = vld [vmem:[%s2 + $0xf0] sm:$0xf]
  %v82 = vld [vmem:[%s2 + $0xf4] sm:$0xf]
  %v83 = vld [vmem:[%s2 + $0xf8] sm:$0xf]
  %v84 = vld [vmem:[%s2 + $0xfc] sm:$0xf]
  %v85 = vld [vmem:[%s2 + $0x100] sm:$0xf]
  %v86 = vld [vmem:[%s2 + $0x104] sm:$0xf]
  %v87 = vld [vmem:[%s2 + $0x108] sm:$0xf]
  %v88 = vld [vmem:[%s2 + $0x10c] sm:$0xf]
  %v89 = vld [vmem:[%s2 + $0x110] sm:$0xf]
  %v90 = vld [vmem:[%s2 + $0x114] sm:$0xf]
  %v91 = vld [vmem:[%s2 + $0x118] sm:$0xf]
  %v92 = vld [vmem:[%s2 + $0x11c] sm:$0xf]
  %v93 = vld [vmem:[%s2 + $0x120] sm:$0xf]
  %v94 = vld [vmem:[%s2 + $0x124] sm:$0xf]
  %v95 = vld [vmem:[%s2 + $0x128] sm:$0xf]
  %v96 = vld [vmem:[%s2 + $0x12c] sm:$0xf]
  %v97 = vld [vmem:[%s2 + $0x130] sm:$0xf]
  %v98 = vld [vmem:[%s2 + $0x134] sm:$0xf]
  %v99 = vld [vmem:[%s2 + $0x138] sm:$0xf]
  %v100 = vld [vmem:[%s2 + $0x13c] sm:$0xf]
  %v101 = vld [vmem:[%s2 + $0x140] sm:$0xf]
  %v102 = vld [vmem:[%s2 + $0x144] sm:$0xf]
  %v103 = vld [vmem:[%s2 + $0x148] sm:$0xf]
  %v104 = vld [vmem:[%s2 + $0x14c] sm:$0xf]
  %v105 = vld [vmem:[%s2 + $0x150] sm:$0xf]
  %v106 = vld [vmem:[%s2 + $0x154] sm:$0xf]
  %v107 = vld [vmem:[%s2 + $0x158] sm:$0xf]
  %v108 = vld [vmem:[%s2 + $0x15c] sm:$0xf]
  %v109 = vld [vmem:[%s2 + $0x160] sm:$0xf]
  %v110 = vld [vmem:[%s2 + $0x164] sm:$0xf]
  %v111 = vld [vmem:[%s2 + $0x168] sm:$0xf]
  %v112 = vld [vmem:[%s2 + $0x16c] sm:$0xf]
  %v113 = vld [vmem:[%s2 + $0x170] sm:$0xf]
  %v114 = vld [vmem:[%s2 + $0x174] sm:$0xf]
  %v115 = vld [vmem:[%s2 + $0x178] sm:$0xf]
  %v116 = vld [vmem:[%s2 + $0x17c] sm:$0xf]
  %v120 = vunpack.c.l.b16 %v18
  %v121 = vunpack.c.h.b16 %v18
  %v122 = vunpack.c.l.b16 %v19
  %v123 = vunpack.c.h.b16 %v19
  %v124 = vunpack.c.l.b16 %v20
  %v125 = vunpack.c.h.b16 %v20
  %v126 = vpack.c.b16 %v120, %v120
  %v127 = vpack.c.b16 %v121, %v121
  %v128 = vpack.c.b16 %v122, %v122
  %v129 = vpack.c.b16 %v123, %v123
  %v130 = vpack.c.b16 %v124, %v124
  %v131 = vpack.c.b16 %v125, %v125
  %v234 = vunpack.c.l.b16 %v21
  %v235 = vunpack.c.l.b16 %v22
  %v236 = vunpack.c.l.b16 %v23
  %v237 = vunpack.c.l.b16 %v24
  %v238 = vunpack.c.l.b16 %v25
  %v239 = vunpack.c.l.b16 %v26
  %v240 = vunpack.c.l.b16 %v27
  %v241 = vunpack.c.l.b16 %v28
  %v242 = vunpack.c.l.b16 %v29
  %v243 = vunpack.c.l.b16 %v30
  %v244 = vunpack.c.l.b16 %v31
  %v245 = vunpack.c.l.b16 %v32
  %v246 = vunpack.c.l.b16 %v33
  %v247 = vunpack.c.l.b16 %v34
  %v248 = vunpack.c.l.b16 %v35
  %v249 = vunpack.c.l.b16 %v36
  %v250 = vunpack.c.l.b16 %v37
  %v251 = vunpack.c.l.b16 %v38
  %v252 = vunpack.c.l.b16 %v39
  %v253 = vunpack.c.l.b16 %v40
  %v254 = vunpack.c.l.b16 %v41
  %v255 = vunpack.c.l.b16 %v42
  %v256 = vunpack.c.l.b16 %v43
  %v257 = vunpack.c.l.b16 %v44
  %v258 = vunpack.c.l.b16 %v45
  %v259 = vunpack.c.l.b16 %v46
  %v260 = vunpack.c.l.b16 %v47
  %v261 = vunpack.c.l.b16 %v48
  %v262 = vunpack.c.l.b16 %v49
  %v263 = vunpack.c.l.b16 %v50
  %v264 = vunpack.c.l.b16 %v51
  %v265 = vunpack.c.l.b16 %v52
  %v266 = vunpack.c.l.b16 %v53
  %v267 = vunpack.c.l.b16 %v54
  %v268 = vunpack.c.l.b16 %v55
  %v269 = vunpack.c.l.b16 %v56
  %v270 = vunpack.c.l.b16 %v57
  %v271 = vunpack.c.l.b16 %v58
  %v272 = vunpack.c.l.b16 %v59
  %v273 = vunpack.c.l.b16 %v60
  %v274 = vunpack.c.l.b16 %v61
  %v275 = vunpack.c.l.b16 %v62
  %v276 = vunpack.c.l.b16 %v63
  %v277 = vunpack.c.l.b16 %v64
  %v278 = vunpack.c.l.b16 %v65
  %v279 = vunpack.c.l.b16 %v66
  %v280 = vunpack.c.l.b16 %v67
  %v281 = vunpack.c.l.b16 %v68
  %v282 = vunpack.c.l.b16 %v69
  %v283 = vunpack.c.l.b16 %v70
  %v284 = vunpack.c.l.b16 %v71
  %v285 = vunpack.c.l.b16 %v72
  %v286 = vunpack.c.l.b16 %v73
  %v287 = vunpack.c.l.b16 %v74
  %v288 = vunpack.c.l.b16 %v75
  %v289 = vunpack.c.l.b16 %v76
  %v290 = vunpack.c.l.b16 %v77
  %v291 = vunpack.c.l.b16 %v78
  %v292 = vunpack.c.l.b16 %v79
  %v293 = vunpack.c.l.b16 %v80
  %v294 = vunpack.c.l.b16 %v81
  %v295 = vunpack.c.l.b16 %v82
  %v296 = vunpack.c.l.b16 %v83
  %v297 = vunpack.c.l.b16 %v84
  %v298 = vunpack.c.l.b16 %v85
  %v299 = vunpack.c.l.b16 %v86
  %v300 = vunpack.c.l.b16 %v87
  %v301 = vunpack.c.l.b16 %v88
  %v302 = vunpack.c.l.b16 %v89
  %v303 = vunpack.c.l.b16 %v90
  %v304 = vunpack.c.l.b16 %v91
  %v305 = vunpack.c.l.b16 %v92
  %v306 = vunpack.c.l.b16 %v93
  %v307 = vunpack.c.l.b16 %v94
  %v308 = vunpack.c.l.b16 %v95
  %v309 = vunpack.c.l.b16 %v96
  %v310 = vunpack.c.l.b16 %v97
  %v311 = vunpack.c.l.b16 %v98
  %v312 = vunpack.c.l.b16 %v99
  %v313 = vunpack.c.l.b16 %v100
  %v314 = vunpack.c.l.b16 %v101
  %v315 = vunpack.c.l.b16 %v102
  %v316 = vunpack.c.l.b16 %v103
  %v317 = vunpack.c.l.b16 %v104
  %v318 = vunpack.c.l.b16 %v105
  %v319 = vunpack.c.l.b16 %v106
  %v320 = vunpack.c.l.b16 %v107
  %v321 = vunpack.c.l.b16 %v108
  %v322 = vunpack.c.l.b16 %v109
  %v323 = vunpack.c.l.b16 %v110
  %v324 = vunpack.c.l.b16 %v111
  %v325 = vunpack.c.l.b16 %v112
  %v326 = vunpack.c.l.b16 %v113
  %v327 = vunpack.c.l.b16 %v114
  %v328 = vunpack.c.l.b16 %v115
  %v329 = vunpack.c.l.b16 %v116
  %v330 = vpack.c.b16 %v235, %v234
  %v331 = vpack.c.b16 %v237, %v236
  %v332 = vpack.c.b16 %v239, %v238
  %v333 = vpack.c.b16 %v241, %v240
  %v334 = vpack.c.b16 %v243, %v242
  %v335 = vpack.c.b16 %v245, %v244
  %v336 = vpack.c.b16 %v247, %v246
  %v337 = vpack.c.b16 %v249, %v248
  %v338 = vpack.c.b16 %v251, %v250
  %v339 = vpack.c.b16 %v253, %v252
  %v340 = vpack.c.b16 %v255, %v254
  %v341 = vpack.c.b16 %v257, %v256
  %v342 = vpack.c.b16 %v259, %v258
  %v343 = vpack.c.b16 %v261, %v260
  %v344 = vpack.c.b16 %v263, %v262
  %v345 = vpack.c.b16 %v265, %v264
  %v346 = vpack.c.b16 %v267, %v266
  %v347 = vpack.c.b16 %v269, %v268
  %v348 = vpack.c.b16 %v271, %v270
  %v349 = vpack.c.b16 %v273, %v272
  %v350 = vpack.c.b16 %v275, %v274
  %v351 = vpack.c.b16 %v277, %v276
  %v352 = vpack.c.b16 %v279, %v278
  %v353 = vpack.c.b16 %v281, %v280
  %v354 = vpack.c.b16 %v283, %v282
  %v355 = vpack.c.b16 %v285, %v284
  %v356 = vpack.c.b16 %v287, %v286
  %v357 = vpack.c.b16 %v289, %v288
  %v358 = vpack.c.b16 %v291, %v290
  %v359 = vpack.c.b16 %v293, %v292
  %v360 = vpack.c.b16 %v295, %v294
  %v361 = vpack.c.b16 %v297, %v296
  %v362 = vpack.c.b16 %v299, %v298
  %v363 = vpack.c.b16 %v301, %v300
  %v364 = vpack.c.b16 %v303, %v302
  %v365 = vpack.c.b16 %v305, %v304
  %v366 = vpack.c.b16 %v307, %v306
  %v367 = vpack.c.b16 %v309, %v308
  %v368 = vpack.c.b16 %v311, %v310
  %v369 = vpack.c.b16 %v313, %v312
  %v370 = vpack.c.b16 %v315, %v314
  %v371 = vpack.c.b16 %v317, %v316
  %v372 = vpack.c.b16 %v319, %v318
  %v373 = vpack.c.b16 %v321, %v320
  %v374 = vpack.c.b16 %v323, %v322
  %v375 = vpack.c.b16 %v325, %v324
  %v376 = vpack.c.b16 %v327, %v326
  %v377 = vpack.c.b16 %v329, %v328
  %426 = vmatprep.subr.bf16.mxu0 0
  %427 = vmatpush1.bf16.msra.mxu0 %v337
  %428 = vmatprep.subr.bf16.mxu0 0
  %429 = vmatpush1.bf16.msra.mxu0 %v336
  %430 = vmatprep.subr.bf16.mxu0 0
  %431 = vmatpush1.bf16.msra.mxu0 %v335
  %432 = vmatprep.subr.bf16.mxu0 0
  %433 = vmatpush1.bf16.msra.mxu0 %v334
  %434 = vmatprep.subr.bf16.mxu0 0
  %435 = vmatpush1.bf16.msra.mxu0 %v333
  %436 = vmatprep.subr.bf16.mxu0 0
  %437 = vmatpush1.bf16.msra.mxu0 %v332
  %438 = vmatprep.subr.bf16.mxu0 0
  %439 = vmatpush1.bf16.msra.mxu0 %v331
  %440 = vmatprep.subr.bf16.mxu0 0
  %441 = vmatpush1.bf16.msra.mxu0 %v330
  %442 = vmatprep.subr.bf16.mxu0 0
  %443 = vmatpush2.bf16.msra.mxu0 %v345
  %444 = vmatprep.subr.bf16.mxu0 0
  %445 = vmatpush2.bf16.msra.mxu0 %v344
  %446 = vmatprep.subr.bf16.mxu0 0
  %447 = vmatpush2.bf16.msra.mxu0 %v343
  %448 = vmatprep.subr.bf16.mxu0 0
  %449 = vmatpush2.bf16.msra.mxu0 %v342
  %450 = vmatprep.subr.bf16.mxu0 0
  %451 = vmatpush2.bf16.msra.mxu0 %v341
  %452 = vmatprep.subr.bf16.mxu0 0
  %453 = vmatpush2.bf16.msra.mxu0 %v340
  %454 = vmatprep.subr.bf16.mxu0 0
  %455 = vmatpush2.bf16.msra.mxu0 %v339
  %456 = vmatprep.subr.bf16.mxu0 0
  %457 = vmatpush2.bf16.msra.mxu0 %v338
  %458 = vmatprep.mubr.bf16.mxu0 %v127
  %459 = vmatmul.mubr.bf16.gmra.mxu0 %v126
  %v460 = vpop.f32.mrf.mxu0
  %v461 = vadd.f32 0.0, %v460
  %v462 = vpop.f32.mrf.mxu0
  %v463 = vpop.f32.mrf.mxu0
  %v464 = vpop.f32.mrf.mxu0
  %465 = vdwg.mxu0
  %466 = vmatprep.subr.bf16.mxu0 0
  %467 = vmatpush1.bf16.msra.mxu0 %v353
  %468 = vmatprep.subr.bf16.mxu0 0
  %469 = vmatpush1.bf16.msra.mxu0 %v352
  %470 = vmatprep.subr.bf16.mxu0 0
  %471 = vmatpush1.bf16.msra.mxu0 %v351
  %472 = vmatprep.subr.bf16.mxu0 0
  %473 = vmatpush1.bf16.msra.mxu0 %v350
  %474 = vmatprep.subr.bf16.mxu0 0
  %475 = vmatpush1.bf16.msra.mxu0 %v349
  %476 = vmatprep.subr.bf16.mxu0 0
  %477 = vmatpush1.bf16.msra.mxu0 %v348
  %478 = vmatprep.subr.bf16.mxu0 0
  %479 = vmatpush1.bf16.msra.mxu0 %v347
  %480 = vmatprep.subr.bf16.mxu0 0
  %481 = vmatpush1.bf16.msra.mxu0 %v346
  %482 = vmatprep.subr.bf16.mxu0 0
  %483 = vmatpush2.bf16.msra.mxu0 %v361
  %484 = vmatprep.subr.bf16.mxu0 0
  %485 = vmatpush2.bf16.msra.mxu0 %v360
  %486 = vmatprep.subr.bf16.mxu0 0
  %487 = vmatpush2.bf16.msra.mxu0 %v359
  %488 = vmatprep.subr.bf16.mxu0 0
  %489 = vmatpush2.bf16.msra.mxu0 %v358
  %490 = vmatprep.subr.bf16.mxu0 0
  %491 = vmatpush2.bf16.msra.mxu0 %v357
  %492 = vmatprep.subr.bf16.mxu0 0
  %493 = vmatpush2.bf16.msra.mxu0 %v356
  %494 = vmatprep.subr.bf16.mxu0 0
  %495 = vmatpush2.bf16.msra.mxu0 %v355
  %496 = vmatprep.subr.bf16.mxu0 0
  %497 = vmatpush2.bf16.msra.mxu0 %v354
  %498 = vmatprep.mubr.bf16.mxu0 %v129
  %499 = vmatmul.mubr.bf16.gmra.mxu0 %v128
  %v500 = vpop.f32.mrf.mxu0
  %v501 = vadd.f32 %v461, %v500
  %v502 = vpop.f32.mrf.mxu0
  %v503 = vpop.f32.mrf.mxu0
  %v504 = vpop.f32.mrf.mxu0
  %505 = vdwg.mxu0
  %506 = vmatprep.subr.bf16.mxu0 0
  %507 = vmatpush1.bf16.msra.mxu0 %v369
  %508 = vmatprep.subr.bf16.mxu0 0
  %509 = vmatpush1.bf16.msra.mxu0 %v368
  %510 = vmatprep.subr.bf16.mxu0 0
  %511 = vmatpush1.bf16.msra.mxu0 %v367
  %512 = vmatprep.subr.bf16.mxu0 0
  %513 = vmatpush1.bf16.msra.mxu0 %v366
  %514 = vmatprep.subr.bf16.mxu0 0
  %515 = vmatpush1.bf16.msra.mxu0 %v365
  %516 = vmatprep.subr.bf16.mxu0 0
  %517 = vmatpush1.bf16.msra.mxu0 %v364
  %518 = vmatprep.subr.bf16.mxu0 0
  %519 = vmatpush1.bf16.msra.mxu0 %v363
  %520 = vmatprep.subr.bf16.mxu0 0
  %521 = vmatpush1.bf16.msra.mxu0 %v362
  %522 = vmatprep.subr.bf16.mxu0 0
  %523 = vmatpush2.bf16.msra.mxu0 %v377
  %524 = vmatprep.subr.bf16.mxu0 0
  %525 = vmatpush2.bf16.msra.mxu0 %v376
  %526 = vmatprep.subr.bf16.mxu0 0
  %527 = vmatpush2.bf16.msra.mxu0 %v375
  %528 = vmatprep.subr.bf16.mxu0 0
  %529 = vmatpush2.bf16.msra.mxu0 %v374
  %530 = vmatprep.subr.bf16.mxu0 0
  %531 = vmatpush2.bf16.msra.mxu0 %v373
  %532 = vmatprep.subr.bf16.mxu0 0
  %533 = vmatpush2.bf16.msra.mxu0 %v372
  %534 = vmatprep.subr.bf16.mxu0 0
  %535 = vmatpush2.bf16.msra.mxu0 %v371
  %536 = vmatprep.subr.bf16.mxu0 0
  %537 = vmatpush2.bf16.msra.mxu0 %v370
  %538 = vmatprep.mubr.bf16.mxu0 %v131
  %539 = vmatmul.mubr.bf16.gmra.mxu0 %v130
  %v540 = vpop.f32.mrf.mxu0
  %v541 = vadd.f32 %v501, %v540
  %v542 = vpop.f32.mrf.mxu0
  %v543 = vpop.f32.mrf.mxu0
  %v544 = vpop.f32.mrf.mxu0
  %545 = vdwg.mxu0
  %v546 = vlaneseq
  %v547 = vshrl.u32 %v546, 7
  %vm548 = vcmp.lt.s32.totalorder %v547, 2
  %550 = vrot.lane.b32.xlu0 %v541, 96
  %v551 = vpop.permute.xlu0 %550
  %v553 = vsel %vm548, %v541, %v551
  %v554 = vld [vmem:[%s3 + $0x50] sm:$0xff]
  %v555 = vld [vmem:[%s3 + $0x60] sm:$0xff]
  %v556 = vld [vmem:[%s3 + $0x70] sm:$0xff]
  %v557 = vld [vmem:[%s3 + $0x80] sm:$0xff]
  %v558 = vld [vmem:[%s1] sm:$0xff]
  %vm559 = vcmask 261120
  %v561 = vsel %vm559, %v558, 0
  %563 = vmatprep.subr.mxu0 0.0
  %564 = vmatpush1.msra.mxu0 0.0
  %565 = vmatprep.subr.mxu0 0.0
  %566 = vmatpush1.msra.mxu0 0.0
  %567 = vmatprep.subr.mxu0 0.0
  %568 = vmatpush1.msra.mxu0 0.0
  %569 = vmatprep.subr.mxu0 0.0
  %570 = vmatpush1.msra.mxu0 0.0
  %571 = vmatprep.subr.mxu0 0.0
  %572 = vmatpush1.msra.mxu0 0.0
  %573 = vmatprep.subr.mxu0 0.0
  %574 = vmatpush1.msra.mxu0 0.0
  %575 = vmatprep.subr.mxu0 0.0
  %576 = vmatpush1.msra.mxu0 0.0
  %577 = vmatprep.subr.mxu0 0.0
  %578 = vmatpush1.msra.mxu0 0.0
  %579 = vmatprep.subr.mxu0 0.0
  %580 = vmatpush1.msra.mxu0 0.0
  %581 = vmatprep.subr.mxu0 0.0
  %582 = vmatpush1.msra.mxu0 0.0
  %583 = vmatprep.subr.mxu0 0.0
  %584 = vmatpush1.msra.mxu0 0.0
  %585 = vmatprep.subr.mxu0 0.0
  %586 = vmatpush1.msra.mxu0 0.0
  %587 = vmatprep.subr.mxu0 0.0
  %588 = vmatpush1.msra.mxu0 %v557
  %589 = vmatprep.subr.mxu0 0.0
  %590 = vmatpush1.msra.mxu0 %v556
  %591 = vmatprep.subr.mxu0 0.0
  %592 = vmatpush1.msra.mxu0 %v555
  %593 = vmatprep.subr.mxu0 0.0
  %594 = vmatpush1.msra.mxu0 %v554
  %595 = vmatprep.subr.mxu0 0.0
  %596 = vmatpush2.msra.mxu0 0.0
  %597 = vmatprep.subr.mxu0 0.0
  %598 = vmatpush2.msra.mxu0 0.0
  %599 = vmatprep.subr.mxu0 0.0
  %600 = vmatpush2.msra.mxu0 0.0
  %601 = vmatprep.subr.mxu0 0.0
  %602 = vmatpush2.msra.mxu0 0.0
  %603 = vmatprep.subr.mxu0 0.0
  %604 = vmatpush2.msra.mxu0 0.0
  %605 = vmatprep.subr.mxu0 0.0
  %606 = vmatpush2.msra.mxu0 0.0
  %607 = vmatprep.subr.mxu0 0.0
  %608 = vmatpush2.msra.mxu0 0.0
  %609 = vmatprep.subr.mxu0 0.0
  %610 = vmatpush2.msra.mxu0 0.0
  %611 = vmatprep.subr.mxu0 0.0
  %612 = vmatpush2.msra.mxu0 0.0
  %613 = vmatprep.subr.mxu0 0.0
  %614 = vmatpush2.msra.mxu0 0.0
  %615 = vmatprep.subr.mxu0 0.0
  %616 = vmatpush2.msra.mxu0 0.0
  %617 = vmatprep.subr.mxu0 0.0
  %618 = vmatpush2.msra.mxu0 0.0
  %619 = vmatprep.subr.mxu0 0.0
  %620 = vmatpush2.msra.mxu0 0.0
  %621 = vmatprep.subr.mxu0 0.0
  %622 = vmatpush2.msra.mxu0 0.0
  %623 = vmatprep.subr.mxu0 0.0
  %624 = vmatpush2.msra.mxu0 0.0
  %625 = vmatprep.subr.mxu0 0.0
  %626 = vmatpush2.msra.mxu0 0.0
  %627 = vmatprep.mubr.f32.mxu0 0.0
  %628 = vmatmul.mubr.f32.gmra.mxu0 %v561
  %v629 = vpop.f32.mrf.mxu0
  %v630 = vadd.f32 0.0, %v629
  %v631 = vpop.f32.mrf.mxu0
  %632 = vdwg.mxu0
  %v633 = vadd.f32 %v553, %v630
  %v634 = vld [vmem:[%s3] sm:$0xff]
  %v635 = vld [vmem:[%s3 + $0x8] sm:$0xff]
  %v636 = vld [vmem:[%s3 + $0x10] sm:$0xff]
  %v637 = vld [vmem:[%s3 + $0x18] sm:$0xff]
  %v638 = vld [vmem:[%s3 + $0x20] sm:$0xff]
  %v639 = vld [vmem:[%s3 + $0x28] sm:$0xff]
  %v640 = vld [vmem:[%s3 + $0x30] sm:$0xff]
  %v641 = vld [vmem:[%s3 + $0x38] sm:$0xff]
  %v642 = vld [vmem:[%s3 + $0x40] sm:$0xff]
  %v643 = vld [vmem:[%s3 + $0x48] sm:$0xff]
  %v645 = vsel %vm559, %v633, 0
  %647 = vmatprep.subr.mxu0 0.0
  %648 = vmatpush1.msra.mxu0 0.0
  %649 = vmatprep.subr.mxu0 0.0
  %650 = vmatpush1.msra.mxu0 0.0
  %651 = vmatprep.subr.mxu0 0.0
  %652 = vmatpush1.msra.mxu0 0.0
  %653 = vmatprep.subr.mxu0 0.0
  %654 = vmatpush1.msra.mxu0 0.0
  %655 = vmatprep.subr.mxu0 0.0
  %656 = vmatpush1.msra.mxu0 0.0
  %657 = vmatprep.subr.mxu0 0.0
  %658 = vmatpush1.msra.mxu0 0.0
  %659 = vmatprep.subr.mxu0 0.0
  %660 = vmatpush1.msra.mxu0 0.0
  %661 = vmatprep.subr.mxu0 0.0
  %662 = vmatpush1.msra.mxu0 0.0
  %663 = vmatprep.subr.mxu0 0.0
  %664 = vmatpush1.msra.mxu0 0.0
  %665 = vmatprep.subr.mxu0 0.0
  %666 = vmatpush1.msra.mxu0 0.0
  %667 = vmatprep.subr.mxu0 0.0
  %668 = vmatpush1.msra.mxu0 0.0
  %669 = vmatprep.subr.mxu0 0.0
  %670 = vmatpush1.msra.mxu0 0.0
  %671 = vmatprep.subr.mxu0 %v641
  %672 = vmatpush1.msra.mxu0 %v640
  %673 = vmatprep.subr.mxu0 %v639
  %674 = vmatpush1.msra.mxu0 %v638
  %675 = vmatprep.subr.mxu0 %v637
  %676 = vmatpush1.msra.mxu0 %v636
  %677 = vmatprep.subr.mxu0 %v635
  %678 = vmatpush1.msra.mxu0 %v634
  %679 = vmatprep.subr.mxu0 0.0
  %680 = vmatpush2.msra.mxu0 0.0
  %681 = vmatprep.subr.mxu0 0.0
  %682 = vmatpush2.msra.mxu0 0.0
  %683 = vmatprep.subr.mxu0 0.0
  %684 = vmatpush2.msra.mxu0 0.0
  %685 = vmatprep.subr.mxu0 0.0
  %686 = vmatpush2.msra.mxu0 0.0
  %687 = vmatprep.subr.mxu0 0.0
  %688 = vmatpush2.msra.mxu0 0.0
  %689 = vmatprep.subr.mxu0 0.0
  %690 = vmatpush2.msra.mxu0 0.0
  %691 = vmatprep.subr.mxu0 0.0
  %692 = vmatpush2.msra.mxu0 0.0
  %693 = vmatprep.subr.mxu0 0.0
  %694 = vmatpush2.msra.mxu0 0.0
  %695 = vmatprep.subr.mxu0 0.0
  %696 = vmatpush2.msra.mxu0 0.0
  %697 = vmatprep.subr.mxu0 0.0
  %698 = vmatpush2.msra.mxu0 0.0
  %699 = vmatprep.subr.mxu0 0.0
  %700 = vmatpush2.msra.mxu0 0.0
  %701 = vmatprep.subr.mxu0 0.0
  %702 = vmatpush2.msra.mxu0 0.0
  %703 = vmatprep.subr.mxu0 0.0
  %704 = vmatpush2.msra.mxu0 0.0
  %705 = vmatprep.subr.mxu0 0.0
  %706 = vmatpush2.msra.mxu0 0.0
  %707 = vmatprep.subr.mxu0 0.0
  %708 = vmatpush2.msra.mxu0 0.0
  %709 = vmatprep.subr.mxu0 0.0
  %710 = vmatpush2.msra.mxu0 0.0
  %711 = vmatprep.mubr.f32.mxu0 0.0
  %712 = vmatmul.mubr.f32.gmra.mxu0 %v645
  %v713 = vpop.f32.mrf.mxu0
  %v714 = vadd.f32 %v642, %v713
  %v715 = vpop.f32.mrf.mxu0
  %v716 = vadd.f32 %v643, %v715
  %717 = vdwg.mxu0
  %vm718 = vcmask 31744
  %v719 = vsel %vm718, %v716, -inf
  %720 = vmax.xlane.f32.xlu0 %v719
  %v721 = vpop.xlane.xlu0 %720
  %v722 = vsub.f32 %v716, %v721
  %v723 = vmul.f32 %v722, 1.442695
  %v724 = vpow.pop %v723
  %v725 = vlaneseq
  %v726 = vand.u32 %v725, 127
  %v727 = vsel %vm718, %v724, -inf
  %728 = vmax.xlane.f32.xlu0 %v727
  %v729 = vpop.xlane.xlu0 %728
  %vm730 = vcmp.eq.f32.partialorder %v724, %v729
  %v731 = vsel %vm730, %v726, 4
  %v732 = vsel %vm718, %v731, 2147483647
  %v733 = vand.u32 %v732, 65535
  %v734 = vshra.s32 %v732, 16
  %v735 = vcvt.s32.f32 %v733
  %v736 = vcvt.s32.f32 %v734
  %737 = vmin.xlane.f32.xlu0 %v736
  %v738 = vpop.xlane.xlu0 %737
  %vm739 = vcmp.eq.f32.partialorder %v736, %v738
  %v740 = vsel %vm739, %v735, inf
  %741 = vmin.xlane.f32.xlu0 %v740
  %v742 = vpop.xlane.xlu0 %741
  %v743 = vcvt.f32.s32 %v742
  %v744 = vcvt.f32.s32 %v738
  %v745 = vshll.u32 %v744, 16
  %v746 = vadd.s32 %v745, %v743
  %vm747 = vcmp.eq.s32.totalorder %v726, %v746
  %v748 = vsel %vm747, -1.0, %v724
  %v749 = vsel %vm718, %v748, -inf
  %750 = vmax.xlane.f32.xlu0 %v749
  %v751 = vpop.xlane.xlu0 %750
  %vm752 = vcmp.eq.f32.partialorder %v748, %v751
  %v753 = vsel %vm752, %v726, 4
  %v754 = vsel %vm718, %v753, 2147483647
  %v755 = vand.u32 %v754, 65535
  %v756 = vshra.s32 %v754, 16
  %v757 = vcvt.s32.f32 %v755
  %v758 = vcvt.s32.f32 %v756
  %759 = vmin.xlane.f32.xlu0 %v758
  %v760 = vpop.xlane.xlu0 %759
  %vm761 = vcmp.eq.f32.partialorder %v758, %v760
  %v762 = vsel %vm761, %v757, inf
  %763 = vmin.xlane.f32.xlu0 %v762
  %v764 = vpop.xlane.xlu0 %763
  %v765 = vcvt.f32.s32 %v764
  %v766 = vcvt.f32.s32 %v760
  %v767 = vshll.u32 %v766, 16
  %v768 = vadd.s32 %v767, %v765
  %vm769 = vcmp.eq.s32.totalorder %v726, %v768
  %vm770 = vmor %vm747, %vm769
  %v771 = vsel %vm770, %v724, 0.0
  %v772 = vsel %vm718, %v771, 0.0
  %773 = vadd.xlane.f32.xlu0 %v772
  %v774 = vpop.xlane.xlu0 %773
  %v775 = vrcp.pop %v774
  %v776 = vmul.f32 %v771, %v775
  %v777 = vld [vmem:[%s3 + $0x90] sm:$0xf]
  %v779 = vsel %vm718, %v776, 0
  %vm781 = vcmask 1043456
  %v783 = vsel %vm781, %v777, 0
  %785 = vmatprep.subr.mxu0 0.0
  %786 = vmatpush1.msra.mxu0 0.0
  %787 = vmatprep.subr.mxu0 0.0
  %788 = vmatpush1.msra.mxu0 0.0
  %789 = vmatprep.subr.mxu0 0.0
  %790 = vmatpush1.msra.mxu0 0.0
  %791 = vmatprep.subr.mxu0 0.0
  %792 = vmatpush1.msra.mxu0 0.0
  %793 = vmatprep.subr.mxu0 0.0
  %794 = vmatpush1.msra.mxu0 0.0
  %795 = vmatprep.subr.mxu0 0.0
  %796 = vmatpush1.msra.mxu0 0.0
  %797 = vmatprep.subr.mxu0 0.0
  %798 = vmatpush1.msra.mxu0 0.0
  %799 = vmatprep.subr.mxu0 0.0
  %800 = vmatpush1.msra.mxu0 0.0
  %801 = vmatprep.subr.mxu0 0.0
  %802 = vmatpush1.msra.mxu0 0.0
  %803 = vmatprep.subr.mxu0 0.0
  %804 = vmatpush1.msra.mxu0 0.0
  %805 = vmatprep.subr.mxu0 0.0
  %806 = vmatpush1.msra.mxu0 0.0
  %807 = vmatprep.subr.mxu0 0.0
  %808 = vmatpush1.msra.mxu0 0.0
  %809 = vmatprep.subr.mxu0 0.0
  %810 = vmatpush1.msra.mxu0 0.0
  %811 = vmatprep.subr.mxu0 0.0
  %812 = vmatpush1.msra.mxu0 0.0
  %813 = vmatprep.subr.mxu0 0.0
  %814 = vmatpush1.msra.mxu0 0.0
  %815 = vmatprep.subr.mxu0 0.0
  %816 = vmatpush1.msra.mxu0 %v783
  %817 = vmatprep.subr.mxu0 0.0
  %818 = vmatpush2.msra.mxu0 0.0
  %819 = vmatprep.subr.mxu0 0.0
  %820 = vmatpush2.msra.mxu0 0.0
  %821 = vmatprep.subr.mxu0 0.0
  %822 = vmatpush2.msra.mxu0 0.0
  %823 = vmatprep.subr.mxu0 0.0
  %824 = vmatpush2.msra.mxu0 0.0
  %825 = vmatprep.subr.mxu0 0.0
  %826 = vmatpush2.msra.mxu0 0.0
  %827 = vmatprep.subr.mxu0 0.0
  %828 = vmatpush2.msra.mxu0 0.0
  %829 = vmatprep.subr.mxu0 0.0
  %830 = vmatpush2.msra.mxu0 0.0
  %831 = vmatprep.subr.mxu0 0.0
  %832 = vmatpush2.msra.mxu0 0.0
  %833 = vmatprep.subr.mxu0 0.0
  %834 = vmatpush2.msra.mxu0 0.0
  %835 = vmatprep.subr.mxu0 0.0
  %836 = vmatpush2.msra.mxu0 0.0
  %837 = vmatprep.subr.mxu0 0.0
  %838 = vmatpush2.msra.mxu0 0.0
  %839 = vmatprep.subr.mxu0 0.0
  %840 = vmatpush2.msra.mxu0 0.0
  %841 = vmatprep.subr.mxu0 0.0
  %842 = vmatpush2.msra.mxu0 0.0
  %843 = vmatprep.subr.mxu0 0.0
  %844 = vmatpush2.msra.mxu0 0.0
  %845 = vmatprep.subr.mxu0 0.0
  %846 = vmatpush2.msra.mxu0 0.0
  %847 = vmatprep.subr.mxu0 0.0
  %848 = vmatpush2.msra.mxu0 0.0
  %849 = vmatprep.mubr.f32.mxu0 0.0
  %850 = vmatmul.mubr.f32.gmra.mxu0 %v779
  %v851 = vpop.f32.mrf.mxu0
  %v852 = vadd.f32 0.0, %v851
  %v853 = vpop.f32.mrf.mxu0
  %854 = vdwg.mxu0
  %v855 = vmul.f32 %v714, %v852
  %856 = vrot.lane.b32.xlu0 %v855, 64
  %v857 = vpop.permute.xlu0 %856
  %v858 = vadd.f32 %v855, %v857
  %859 = vrot.lane.b32.xlu0 %v858, 32
  %v860 = vpop.permute.xlu0 %859
  %v861 = vadd.f32 %v858, %v860
  %v862 = vsel %vm559, %v861, 0.0
  %863 = vadd.xlane.f32.xlu0 %v862
  %v864 = vpop.xlane.xlu0 %863
  %v865 = vrcp.pop 32.0
  %v866 = vmul.f32 %v864, %v865
  %v867 = vsub.f32 %v861, %v866
  %v868 = vmul.f32 %v867, %v867
  %v869 = vsel %vm559, %v868, 0.0
  %870 = vadd.xlane.f32.xlu0 %v869
  %v871 = vpop.xlane.xlu0 %870
  %v872 = vmul.f32 %v871, %v865
  %v873 = vadd.f32 %v872, 1e-05
  %v874 = vrsqrt.pop %v873
  %v875 = vmul.f32 %v867, %v874
  %v876 = vld [vmem:[%s3 + $0x94] ss:$0 sm:$0xff]
  %v877 = vld [vmem:[%s3 + $0x95] ss:$0 sm:$0xff]
  %v878 = vmul.f32 %v875, %v876
  %v879 = vadd.f32 %v878, %v877
  %880 = vst.msk [vmem:[%s4] sm:$0xff] %vm559, %v879
  // Predicated region
  $region18: #{unigraph2_forward.1} parent=0 // pred_check
    _
  $region19: #{unigraph2_forward.1} parent=0 // pred_check_branch
    %882 = sbr.rel (0) target = $region21
  $region20: #{unigraph2_forward.1} parent=0 // pred_region
    _
  $region21: #{unigraph2_forward.1} parent=0 // pred_fallthru
    _
  // Predicated region
  $region22: #{unigraph2_forward.1} parent=0 // pred_check
    _
  $region23: #{unigraph2_forward.1} parent=0 // pred_check_branch
    %884 = sbr.rel (0) target = $region25
  $region24: #{unigraph2_forward.1} parent=0 // pred_region
    _
  $region25: #{unigraph2_forward.1} parent=0 // pred_fallthru
    _

</llo_original>
